<compile_context>
chip_gen: v7x
topology: tpu7x:2x2x1
jax: 0.10.0
libtpu: 0.0.40
codegen_flags: <defaults>
</compile_context>

<pallas_src>
import functools

import jax
import jax.numpy as jnp
from jax import lax
from jax.experimental import pallas as pl
from jax.experimental.pallas import tpu as pltpu


LN_EPS = 1e-5    # PyTorch nn.LayerNorm default
LANE = 128       # TPU lane width
SUBLANE = 8      # TPU sublane count (f32)


def _round_up(x, m):
    return m * ((x + m - 1) // m)


def _layernorm_onepass(x, gamma, beta):
    # One-pass mean / mean-of-squares (single data sweep for the XLU reductions).
    mu = jnp.mean(x, axis=-1, keepdims=True)
    msq = jnp.mean(x * x, axis=-1, keepdims=True)
    var = jnp.maximum(msq - mu * mu, 0.0)   # guard against f32 cancellation
    return (x - mu) * lax.rsqrt(var + LN_EPS) * gamma + beta


def actor_kernel(s_ref,
                 w1_ref, b1_ref, g1_ref, be1_ref,
                 w2_ref, b2_ref, g2_ref, be2_ref,
                 w3_ref, b3_ref,
                 out_ref):
    # fc1 -> LayerNorm -> ReLU  (bf16 MXU inputs, f32 accumulate / elementwise)
    x = jnp.dot(s_ref[...].astype(jnp.bfloat16), w1_ref[...],
                preferred_element_type=jnp.float32)
    x = x + b1_ref[...]
    x = _layernorm_onepass(x, g1_ref[...], be1_ref[...])
    x = jnp.maximum(x, 0.0)

    # fc2 -> LayerNorm -> ReLU
    x = jnp.dot(x.astype(jnp.bfloat16), w2_ref[...],
                preferred_element_type=jnp.float32)
    x = x + b2_ref[...]
    x = _layernorm_onepass(x, g2_ref[...], be2_ref[...])
    x = jnp.maximum(x, 0.0)

    # mu -> tanh (output feature dim pre-padded to a lane-dense 128)
    x = jnp.dot(x.astype(jnp.bfloat16), w3_ref[...],
                preferred_element_type=jnp.float32)
    x = x + b3_ref[...]
    out_ref[...] = jnp.tanh(x).astype(out_ref.dtype)


def prepare_params(raw_params):
    """One-time parameter prep (keep OUT of the per-step hot path).

    Casts MXU weights to bf16 and pads the mu layer to a 128-lane output so the
    kernel's final store is an unmasked, lane-dense vst. Returns the prepared
    param tuple plus the true n_actions for output slicing.
    """
    (w1, b1, g1, be1, w2, b2, g2, be2, w3, b3) = raw_params
    n_actions = w3.shape[1]
    padded_actions = _round_up(n_actions, LANE)
    if padded_actions != n_actions:
        # zero-padded columns -> tanh(0) = 0, sliced away by the wrapper
        w3 = jnp.pad(w3, ((0, 0), (0, padded_actions - n_actions)))
        b3 = jnp.pad(b3, ((0, 0), (0, padded_actions - n_actions)))
    prepared = (w1.astype(jnp.bfloat16), b1.astype(jnp.float32),
                g1.astype(jnp.float32), be1.astype(jnp.float32),
                w2.astype(jnp.bfloat16), b2.astype(jnp.float32),
                g2.astype(jnp.float32), be2.astype(jnp.float32),
                w3.astype(jnp.bfloat16), b3.astype(jnp.float32))
    return prepared, n_actions


def _choose_block_batch(batch, max_block_batch):
    """Adaptive batch tile: minimal sublane padding for tiny batches, capped tile
    for large batches, and >= 2 grid steps whenever possible (megacore sharding)."""
    rows = _round_up(batch, SUBLANE)
    block = min(rows, _round_up(max_block_batch, SUBLANE))
    if rows >= 2 * SUBLANE:
        block = min(block, _round_up(pl.cdiv(rows, 2), SUBLANE))
    num_blocks = pl.cdiv(rows, block)
    return block, num_blocks


def _vmem_bytes_estimate(block, in_dim, fc1, fc2, pad_act):
    act_io = 2 * 4 * block * (in_dim + pad_act)                      # dbl-buffered in/out blocks
    weights = 2 * 2 * (in_dim * fc1 + fc1 * fc2 + fc2 * pad_act)     # dbl-buffered bf16 residents
    vectors = 2 * 4 * (3 * fc1 + 3 * fc2 + pad_act)                  # biases / LN params
    working = 6 * block * (fc1 + fc2)                                # f32 acts + bf16 MXU copies
    return act_io + weights + vectors + working


@functools.partial(jax.jit,
                   static_argnames=("n_actions", "max_block_batch", "out_dtype"))
def actor_forward(s, prepared_params, *, n_actions, max_block_batch=1024,
                  out_dtype=jnp.float32):
    (w1, b1, g1, be1, w2, b2, g2, be2, w3, b3) = prepared_params
    batch, in_dim = s.shape
    fc1_units = w1.shape[1]
    fc2_units = w2.shape[1]
    padded_actions = w3.shape[1]   # already 128-lane padded by prepare_params

    block_batch, num_blocks = _choose_block_batch(batch, max_block_batch)
    padded_batch = num_blocks * block_batch
    if padded_batch != batch:
        s = jnp.pad(s, ((0, padded_batch - batch), (0, 0)))

    vmem = pltpu.MemorySpace.VMEM
    act_spec = pl.BlockSpec((block_batch, in_dim), lambda i: (i, 0),
                            memory_space=vmem)
    # Grid-invariant operands stay VMEM-resident (index_map ignores the grid index).
    # TODO(synk): switch residents to pipeline_mode=pl.Buffered(1) once top-level
    # pallas_call per-operand buffer counts are confirmed on this toolchain; their
    # double buffer is accounted for in the VMEM budget below instead.
    resident = lambda a: pl.BlockSpec(a.shape, lambda i: (0, 0),  # noqa: E731
                                      memory_space=vmem)
    out_spec = pl.BlockSpec((block_batch, padded_actions), lambda i: (i, 0),
                            memory_space=vmem)

    operands = (s, w1, b1, g1, be1, w2, b2, g2, be2, w3, b3)
    in_specs = [act_spec] + [resident(a) for a in operands[1:]]

    vmem_limit = int(min(48 * 2**20,
                         max(16 * 2**20,
                             2 * _vmem_bytes_estimate(block_batch, in_dim,
                                                      fc1_units, fc2_units,
                                                      padded_actions))))

    out_itemsize = jnp.dtype(out_dtype).itemsize
    flops = 2 * padded_batch * (in_dim * fc1_units
                                + fc1_units * fc2_units
                                + fc2_units * padded_actions)
    transcendentals = padded_batch * (fc1_units + fc2_units + padded_actions)
    bytes_accessed = (
        4 * padded_batch * in_dim
        + out_itemsize * padded_batch * padded_actions
        + 2 * (in_dim * fc1_units + fc1_units * fc2_units
               + fc2_units * padded_actions)
        + 4 * (3 * fc1_units + 3 * fc2_units + padded_actions))

    out_padded = pl.pallas_call(
        actor_kernel,
        out_shape=jax.ShapeDtypeStruct((padded_batch, padded_actions), out_dtype),
        grid=(num_blocks,),
        in_specs=in_specs,
        out_specs=out_spec,
        compiler_params=pltpu.CompilerParams(
            dimension_semantics=("parallel",),
            vmem_limit_bytes=vmem_limit),
        cost_estimate=pl.CostEstimate(flops=flops,
                                      transcendentals=transcendentals,
                                      bytes_accessed=bytes_accessed),
    )(*operands)

    return out_padded[:batch, :n_actions]


def init_params(key, input_dim, fc1_units, fc2_units, n_actions):
    """Deterministic init mirroring the PyTorch module's scheme (f32, unprepared)."""
    k1, k2, k3, k4, k5, k6 = jax.random.split(key, 6)

    # f1 = 1/sqrt(fc1.weight.size(0)) = 1/sqrt(fc1_units)   (matches reference code)
    f1 = 1.0 / jnp.sqrt(jnp.float32(fc1_units))
    w1 = jax.random.uniform(k1, (input_dim, fc1_units), jnp.float32, -f1, f1)
    b1 = jax.random.uniform(k2, (1, fc1_units), jnp.float32, -f1, f1)

    f2 = 1.0 / jnp.sqrt(jnp.float32(fc2_units))
    w2 = jax.random.uniform(k3, (fc1_units, fc2_units), jnp.float32, -f2, f2)
    b2 = jax.random.uniform(k4, (1, fc2_units), jnp.float32, -f2, f2)

    f3 = 0.003
    w3 = jax.random.uniform(k5, (fc2_units, n_actions), jnp.float32, -f3, f3)
    b3 = jax.random.uniform(k6, (1, n_actions), jnp.float32, -f3, f3)

    # LayerNorm: elementwise affine defaults (weight=1, bias=0)
    g1 = jnp.ones((1, fc1_units), jnp.float32)
    be1 = jnp.zeros((1, fc1_units), jnp.float32)
    g2 = jnp.ones((1, fc2_units), jnp.float32)
    be2 = jnp.zeros((1, fc2_units), jnp.float32)

    return (w1, b1, g1, be1, w2, b2, g2, be2, w3, b3)


def _layernorm_twopass(x, gamma, beta):
    # PyTorch-equivalent two-pass LayerNorm (for the f32 semantic reference).
    mu = jnp.mean(x, axis=-1, keepdims=True)
    var = jnp.mean((x - mu) ** 2, axis=-1, keepdims=True)
    return (x - mu) / jnp.sqrt(var + LN_EPS) * gamma + beta


def reference_forward_f32(s, raw_params):
    """Pure-f32, two-pass-LN reference (matches the PyTorch module semantics)."""
    (w1, b1, g1, be1, w2, b2, g2, be2, w3, b3) = raw_params
    x = s @ w1 + b1
    x = _layernorm_twopass(x, g1, be1)
    x = jnp.maximum(x, 0.0)
    x = x @ w2 + b2
    x = _layernorm_twopass(x, g2, be2)
    x = jnp.maximum(x, 0.0)
    return jnp.tanh(x @ w3 + b3)


def reference_forward_mixed(s, raw_params):
    """Mirrors the kernel's bf16-matmul / f32-elementwise mixed precision."""
    (w1, b1, g1, be1, w2, b2, g2, be2, w3, b3) = raw_params
    bf = jnp.bfloat16

    def dot(a, w):
        return jnp.dot(a.astype(bf), w.astype(bf),
                       preferred_element_type=jnp.float32)

    x = dot(s, w1) + b1
    x = _layernorm_onepass(x, g1, be1)
    x = jnp.maximum(x, 0.0)
    x = dot(x, w2) + b2
    x = _layernorm_onepass(x, g2, be2)
    x = jnp.maximum(x, 0.0)
    return jnp.tanh(dot(x, w3) + b3)


if __name__ == "__main__":
    key = jax.random.PRNGKey(0)
    k1, k2, k3, k4 = jax.random.split(key, 4)

    # ---- Test 1: tiny batch (pads only to 8 rows, single grid block) ----
    batch, input_dim, fc1_units, fc2_units, n_actions = 4, 32, 256, 128, 8
    s = jax.random.normal(k1, (batch, input_dim), jnp.float32)
    raw = init_params(k2, input_dim, fc1_units, fc2_units, n_actions)
    prepared, n_act = prepare_params(raw)

    out = jax.block_until_ready(actor_forward(s, prepared, n_actions=n_act))
    assert out.shape == (batch, n_actions)
    assert jnp.allclose(out, reference_forward_mixed(s, raw),
                        atol=1e-3, rtol=1e-3), "mismatch vs mixed-precision reference"
    assert jnp.allclose(out, reference_forward_f32(s, raw),
                        atol=1e-2, rtol=1e-2), "mismatch vs f32 (PyTorch-semantics) reference"

    # ---- Test 2: production widths (400/300), multi-block grid (2 blocks so both
    #      v7x TensorCores get work), ragged batch, bf16 lane-dense output ----
    batch2, input_dim2, fc1b, fc2b, n_acts2 = 300, 33, 400, 300, 4
    s2 = jax.random.normal(k3, (batch2, input_dim2), jnp.float32)
    raw2 = init_params(k4, input_dim2, fc1b, fc2b, n_acts2)
    prepared2, n_act2 = prepare_params(raw2)

    out2 = jax.block_until_ready(
        actor_forward(s2, prepared2, n_actions=n_act2, out_dtype=jnp.bfloat16))
    assert out2.shape == (batch2, n_acts2) and out2.dtype == jnp.bfloat16
    out2_f32 = out2.astype(jnp.float32)
    assert jnp.allclose(out2_f32, reference_forward_mixed(s2, raw2),
                        atol=8e-3, rtol=8e-3), "mismatch vs mixed-precision reference (test 2)"
    assert jnp.allclose(out2_f32, reference_forward_f32(s2, raw2),
                        atol=2e-2, rtol=2e-2), "mismatch vs f32 reference (test 2)"

    print("KERNEL_OK")
</pallas_src>

<mosaic_0001>
module attributes {stable_mosaic.version = 11 : i64} {
  func.func @actor_kernel(%arg0: i32, %arg1: memref<8x32xf32, #tpu.memory_space<vmem>>, %arg2: memref<32x256xbf16, #tpu.memory_space<vmem>>, %arg3: memref<1x256xf32, #tpu.memory_space<vmem>>, %arg4: memref<1x256xf32, #tpu.memory_space<vmem>>, %arg5: memref<1x256xf32, #tpu.memory_space<vmem>>, %arg6: memref<256x128xbf16, #tpu.memory_space<vmem>>, %arg7: memref<1x128xf32, #tpu.memory_space<vmem>>, %arg8: memref<1x128xf32, #tpu.memory_space<vmem>>, %arg9: memref<1x128xf32, #tpu.memory_space<vmem>>, %arg10: memref<128x128xbf16, #tpu.memory_space<vmem>>, %arg11: memref<1x128xf32, #tpu.memory_space<vmem>>, %arg12: memref<8x128xf32, #tpu.memory_space<vmem>>) attributes {dimension_semantics = [#tpu.dimension_semantics<parallel>], iteration_bounds = array<i64: 1>, scalar_prefetch = 0 : i64, scratch_operands = 0 : i64, tpu.core_type = #tpu.core_type<tc>, window_params = [{transform_indices = @transform_0, window_bounds = array<i64: 8, 32>}, {pipeline_mode = #tpu.pipeline_mode<synchronous>, transform_indices = @transform_1, window_bounds = array<i64: 32, 256>}, {pipeline_mode = #tpu.pipeline_mode<synchronous>, transform_indices = @transform_2, window_bounds = array<i64: 1, 256>}, {pipeline_mode = #tpu.pipeline_mode<synchronous>, transform_indices = @transform_3, window_bounds = array<i64: 1, 256>}, {pipeline_mode = #tpu.pipeline_mode<synchronous>, transform_indices = @transform_4, window_bounds = array<i64: 1, 256>}, {pipeline_mode = #tpu.pipeline_mode<synchronous>, transform_indices = @transform_5, window_bounds = array<i64: 256, 128>}, {pipeline_mode = #tpu.pipeline_mode<synchronous>, transform_indices = @transform_6, window_bounds = array<i64: 1, 128>}, {pipeline_mode = #tpu.pipeline_mode<synchronous>, transform_indices = @transform_7, window_bounds = array<i64: 1, 128>}, {pipeline_mode = #tpu.pipeline_mode<synchronous>, transform_indices = @transform_8, window_bounds = array<i64: 1, 128>}, {pipeline_mode = #tpu.pipeline_mode<synchronous>, transform_indices = @transform_9, window_bounds = array<i64: 128, 128>}, {pipeline_mode = #tpu.pipeline_mode<synchronous>, transform_indices = @transform_10, window_bounds = array<i64: 1, 128>}, {transform_indices = @transform_11, window_bounds = array<i64: 8, 128>}]} {
    %c0 = arith.constant 0 : index
    %c0_0 = arith.constant 0 : index
    %0 = vector.load %arg1[%c0, %c0_0] : memref<8x32xf32, #tpu.memory_space<vmem>>, vector<8x32xf32>
    %1 = arith.truncf %0 : vector<8x32xf32> to vector<8x32xbf16>
    %c0_1 = arith.constant 0 : index
    %c0_2 = arith.constant 0 : index
    %2 = vector.load %arg2[%c0_1, %c0_2] : memref<32x256xbf16, #tpu.memory_space<vmem>>, vector<32x256xbf16>
    %cst = arith.constant dense<0.000000e+00> : vector<8x256xf32>
    %3 = tpu.matmul %1, %2, %cst {dimension_numbers = #tpu.dot_dimension_numbers<[1], [0], [0], [1], [0, 0, 1, 1], [], []>} : vector<8x32xbf16>, vector<32x256xbf16>, vector<8x256xf32> -> vector<8x256xf32>
    %c0_3 = arith.constant 0 : index
    %c0_4 = arith.constant 0 : index
    %4 = vector.load %arg3[%c0_3, %c0_4] : memref<1x256xf32, #tpu.memory_space<vmem>>, vector<1x256xf32>
    %5 = vector.broadcast %4 : vector<1x256xf32> to vector<8x256xf32>
    %6 = arith.addf %3, %5 : vector<8x256xf32>
    %c0_5 = arith.constant 0 : index
    %c0_6 = arith.constant 0 : index
    %7 = vector.load %arg4[%c0_5, %c0_6] : memref<1x256xf32, #tpu.memory_space<vmem>>, vector<1x256xf32>
    %c0_7 = arith.constant 0 : index
    %c0_8 = arith.constant 0 : index
    %8 = vector.load %arg5[%c0_7, %c0_8] : memref<1x256xf32, #tpu.memory_space<vmem>>, vector<1x256xf32>
    %cst_9 = arith.constant dense<0.000000e+00> : vector<8xf32>
    %9 = vector.multi_reduction <add>, %6, %cst_9 [1] : vector<8x256xf32> to vector<8xf32>
    %10 = vector.shape_cast %9 : vector<8xf32> to vector<8x1xf32>
    %cst_10 = arith.constant 2.560000e+02 : f32
    %11 = vector.broadcast %cst_10 : f32 to vector<8x1xf32>
    %12 = arith.divf %10, %11 : vector<8x1xf32>
    %13 = arith.mulf %6, %6 : vector<8x256xf32>
    %cst_11 = arith.constant dense<0.000000e+00> : vector<8xf32>
    %14 = vector.multi_reduction <add>, %13, %cst_11 [1] : vector<8x256xf32> to vector<8xf32>
    %15 = vector.shape_cast %14 : vector<8xf32> to vector<8x1xf32>
    %cst_12 = arith.constant 2.560000e+02 : f32
    %16 = vector.broadcast %cst_12 : f32 to vector<8x1xf32>
    %17 = arith.divf %15, %16 : vector<8x1xf32>
    %18 = arith.mulf %12, %12 : vector<8x1xf32>
    %19 = arith.subf %17, %18 : vector<8x1xf32>
    %cst_13 = arith.constant 0.000000e+00 : f32
    %20 = vector.broadcast %cst_13 : f32 to vector<8x1xf32>
    %21 = arith.maximumf %19, %20 : vector<8x1xf32>
    %22 = vector.broadcast %12 : vector<8x1xf32> to vector<8x256xf32>
    %23 = arith.subf %6, %22 : vector<8x256xf32>
    %cst_14 = arith.constant 9.99999974E-6 : f32
    %24 = vector.broadcast %cst_14 : f32 to vector<8x1xf32>
    %25 = arith.addf %21, %24 : vector<8x1xf32>
    %26 = math.rsqrt %25 : vector<8x1xf32>
    %27 = vector.broadcast %26 : vector<8x1xf32> to vector<8x256xf32>
    %28 = arith.mulf %23, %27 : vector<8x256xf32>
    %29 = vector.broadcast %7 : vector<1x256xf32> to vector<8x256xf32>
    %30 = arith.mulf %28, %29 : vector<8x256xf32>
    %31 = vector.broadcast %8 : vector<1x256xf32> to vector<8x256xf32>
    %32 = arith.addf %30, %31 : vector<8x256xf32>
    %cst_15 = arith.constant 0.000000e+00 : f32
    %33 = vector.broadcast %cst_15 : f32 to vector<8x256xf32>
    %34 = arith.maximumf %32, %33 : vector<8x256xf32>
    %35 = arith.truncf %34 : vector<8x256xf32> to vector<8x256xbf16>
    %c0_16 = arith.constant 0 : index
    %c0_17 = arith.constant 0 : index
    %36 = vector.load %arg6[%c0_16, %c0_17] : memref<256x128xbf16, #tpu.memory_space<vmem>>, vector<256x128xbf16>
    %cst_18 = arith.constant dense<0.000000e+00> : vector<8x128xf32>
    %37 = tpu.matmul %35, %36, %cst_18 {dimension_numbers = #tpu.dot_dimension_numbers<[1], [0], [0], [1], [0, 0, 1, 1], [], []>} : vector<8x256xbf16>, vector<256x128xbf16>, vector<8x128xf32> -> vector<8x128xf32>
    %c0_19 = arith.constant 0 : index
    %c0_20 = arith.constant 0 : index
    %38 = vector.load %arg7[%c0_19, %c0_20] : memref<1x128xf32, #tpu.memory_space<vmem>>, vector<1x128xf32>
    %39 = vector.broadcast %38 : vector<1x128xf32> to vector<8x128xf32>
    %40 = arith.addf %37, %39 : vector<8x128xf32>
    %c0_21 = arith.constant 0 : index
    %c0_22 = arith.constant 0 : index
    %41 = vector.load %arg8[%c0_21, %c0_22] : memref<1x128xf32, #tpu.memory_space<vmem>>, vector<1x128xf32>
    %c0_23 = arith.constant 0 : index
    %c0_24 = arith.constant 0 : index
    %42 = vector.load %arg9[%c0_23, %c0_24] : memref<1x128xf32, #tpu.memory_space<vmem>>, vector<1x128xf32>
    %cst_25 = arith.constant dense<0.000000e+00> : vector<8xf32>
    %43 = vector.multi_reduction <add>, %40, %cst_25 [1] : vector<8x128xf32> to vector<8xf32>
    %44 = vector.shape_cast %43 : vector<8xf32> to vector<8x1xf32>
    %cst_26 = arith.constant 1.280000e+02 : f32
    %45 = vector.broadcast %cst_26 : f32 to vector<8x1xf32>
    %46 = arith.divf %44, %45 : vector<8x1xf32>
    %47 = arith.mulf %40, %40 : vector<8x128xf32>
    %cst_27 = arith.constant dense<0.000000e+00> : vector<8xf32>
    %48 = vector.multi_reduction <add>, %47, %cst_27 [1] : vector<8x128xf32> to vector<8xf32>
    %49 = vector.shape_cast %48 : vector<8xf32> to vector<8x1xf32>
    %cst_28 = arith.constant 1.280000e+02 : f32
    %50 = vector.broadcast %cst_28 : f32 to vector<8x1xf32>
    %51 = arith.divf %49, %50 : vector<8x1xf32>
    %52 = arith.mulf %46, %46 : vector<8x1xf32>
    %53 = arith.subf %51, %52 : vector<8x1xf32>
    %cst_29 = arith.constant 0.000000e+00 : f32
    %54 = vector.broadcast %cst_29 : f32 to vector<8x1xf32>
    %55 = arith.maximumf %53, %54 : vector<8x1xf32>
    %56 = vector.broadcast %46 : vector<8x1xf32> to vector<8x128xf32>
    %57 = arith.subf %40, %56 : vector<8x128xf32>
    %cst_30 = arith.constant 9.99999974E-6 : f32
    %58 = vector.broadcast %cst_30 : f32 to vector<8x1xf32>
    %59 = arith.addf %55, %58 : vector<8x1xf32>
    %60 = math.rsqrt %59 : vector<8x1xf32>
    %61 = vector.broadcast %60 : vector<8x1xf32> to vector<8x128xf32>
    %62 = arith.mulf %57, %61 : vector<8x128xf32>
    %63 = vector.broadcast %41 : vector<1x128xf32> to vector<8x128xf32>
    %64 = arith.mulf %62, %63 : vector<8x128xf32>
    %65 = vector.broadcast %42 : vector<1x128xf32> to vector<8x128xf32>
    %66 = arith.addf %64, %65 : vector<8x128xf32>
    %cst_31 = arith.constant 0.000000e+00 : f32
    %67 = vector.broadcast %cst_31 : f32 to vector<8x128xf32>
    %68 = arith.maximumf %66, %67 : vector<8x128xf32>
    %69 = arith.truncf %68 : vector<8x128xf32> to vector<8x128xbf16>
    %c0_32 = arith.constant 0 : index
    %c0_33 = arith.constant 0 : index
    %70 = vector.load %arg10[%c0_32, %c0_33] : memref<128x128xbf16, #tpu.memory_space<vmem>>, vector<128x128xbf16>
    %cst_34 = arith.constant dense<0.000000e+00> : vector<8x128xf32>
    %71 = tpu.matmul %69, %70, %cst_34 {dimension_numbers = #tpu.dot_dimension_numbers<[1], [0], [0], [1], [0, 0, 1, 1], [], []>} : vector<8x128xbf16>, vector<128x128xbf16>, vector<8x128xf32> -> vector<8x128xf32>
    %c0_35 = arith.constant 0 : index
    %c0_36 = arith.constant 0 : index
    %72 = vector.load %arg11[%c0_35, %c0_36] : memref<1x128xf32, #tpu.memory_space<vmem>>, vector<1x128xf32>
    %73 = vector.broadcast %72 : vector<1x128xf32> to vector<8x128xf32>
    %74 = arith.addf %71, %73 : vector<8x128xf32>
    %75 = math.tanh %74 : vector<8x128xf32>
    %c0_37 = arith.constant 0 : index
    %c0_38 = arith.constant 0 : index
    %76 = vector.load %arg12[%c0_37, %c0_38] : memref<8x128xf32, #tpu.memory_space<vmem>>, vector<8x128xf32>
    tpu.vector_store %arg12[%c0_37, %c0_38], %75 {strides = array<i32>} : memref<8x128xf32, #tpu.memory_space<vmem>>, vector<8x128xf32>,
    return
  }
  func.func @transform_0(%arg0: i32) -> (i32, i32) {
    %c0_i32 = arith.constant 0 : i32
    %c0_i32_0 = arith.constant 0 : i32
    return %arg0, %c0_i32 : i32, i32
  }
  func.func @transform_1(%arg0: i32) -> (i32, i32) {
    %c0_i32 = arith.constant 0 : i32
    %c0_i32_0 = arith.constant 0 : i32
    %c0_i32_1 = arith.constant 0 : i32
    return %c0_i32, %c0_i32_0 : i32, i32
  }
  func.func @transform_2(%arg0: i32) -> (i32, i32) {
    %c0_i32 = arith.constant 0 : i32
    %c0_i32_0 = arith.constant 0 : i32
    %c0_i32_1 = arith.constant 0 : i32
    return %c0_i32, %c0_i32_0 : i32, i32
  }
  func.func @transform_3(%arg0: i32) -> (i32, i32) {
    %c0_i32 = arith.constant 0 : i32
    %c0_i32_0 = arith.constant 0 : i32
    %c0_i32_1 = arith.constant 0 : i32
    return %c0_i32, %c0_i32_0 : i32, i32
  }
  func.func @transform_4(%arg0: i32) -> (i32, i32) {
    %c0_i32 = arith.constant 0 : i32
    %c0_i32_0 = arith.constant 0 : i32
    %c0_i32_1 = arith.constant 0 : i32
    return %c0_i32, %c0_i32_0 : i32, i32
  }
  func.func @transform_5(%arg0: i32) -> (i32, i32) {
    %c0_i32 = arith.constant 0 : i32
    %c0_i32_0 = arith.constant 0 : i32
    %c0_i32_1 = arith.constant 0 : i32
    return %c0_i32, %c0_i32_0 : i32, i32
  }
  func.func @transform_6(%arg0: i32) -> (i32, i32) {
    %c0_i32 = arith.constant 0 : i32
    %c0_i32_0 = arith.constant 0 : i32
    %c0_i32_1 = arith.constant 0 : i32
    return %c0_i32, %c0_i32_0 : i32, i32
  }
  func.func @transform_7(%arg0: i32) -> (i32, i32) {
    %c0_i32 = arith.constant 0 : i32
    %c0_i32_0 = arith.constant 0 : i32
    %c0_i32_1 = arith.constant 0 : i32
    return %c0_i32, %c0_i32_0 : i32, i32
  }
  func.func @transform_8(%arg0: i32) -> (i32, i32) {
    %c0_i32 = arith.constant 0 : i32
    %c0_i32_0 = arith.constant 0 : i32
    %c0_i32_1 = arith.constant 0 : i32
    return %c0_i32, %c0_i32_0 : i32, i32
  }
  func.func @transform_9(%arg0: i32) -> (i32, i32) {
    %c0_i32 = arith.constant 0 : i32
    %c0_i32_0 = arith.constant 0 : i32
    %c0_i32_1 = arith.constant 0 : i32
    return %c0_i32, %c0_i32_0 : i32, i32
  }
  func.func @transform_10(%arg0: i32) -> (i32, i32) {
    %c0_i32 = arith.constant 0 : i32
    %c0_i32_0 = arith.constant 0 : i32
    %c0_i32_1 = arith.constant 0 : i32
    return %c0_i32, %c0_i32_0 : i32, i32
  }
  func.func @transform_11(%arg0: i32) -> (i32, i32) {
    %c0_i32 = arith.constant 0 : i32
    %c0_i32_0 = arith.constant 0 : i32
    return %arg0, %c0_i32 : i32, i32
  }
}

</mosaic_0001>

<llo_original>
// kernel: actor_forward.1
$region0: #{actor_forward.1}
  #allocation0 [shape = 'u32[]', space=smem, size = 0x4, offset = 0x4, fixed_abs, tag = 'smem constant byte address 0x4 - core index']
  #allocation1 [shape = 'u32[144,128]{1,0:T(1,128)}', space=vmem, size = 0x12000, scoped, tag = 'internal scratch']
  %s0 = inlined_call_operand.vmem [shape: f32[8,32], index: 0, kind: input, shape index: {}]
  %s1 = inlined_call_operand.hbm [shape: bf16[32,256], index: 1, kind: input, shape index: {}]
  %s2 = inlined_call_operand.vmem [shape: f32[1,256], index: 2, kind: input, shape index: {}]
  %s3 = inlined_call_operand.vmem [shape: f32[1,256], index: 3, kind: input, shape index: {}]
  %s4 = inlined_call_operand.vmem [shape: f32[1,256], index: 4, kind: input, shape index: {}]
  %s5 = inlined_call_operand.hbm [shape: bf16[256,128], index: 5, kind: input, shape index: {}]
  %s6 = inlined_call_operand.vmem [shape: f32[1,128], index: 6, kind: input, shape index: {}]
  %s7 = inlined_call_operand.vmem [shape: f32[1,128], index: 7, kind: input, shape index: {}]
  %s8 = inlined_call_operand.vmem [shape: f32[1,128], index: 8, kind: input, shape index: {}]
  %s9 = inlined_call_operand.hbm [shape: bf16[128,128], index: 9, kind: input, shape index: {}]
  %s10 = inlined_call_operand.vmem [shape: f32[1,128], index: 10, kind: input, shape index: {}]
  %s11 = inlined_call_operand.vmem [shape: f32[8,128], index: 11, kind: output, shape index: {}]
  %s12 = sld [smem:[#allocation0]]
  $region66: #{actor_forward.1} parent=0
    _
  %s14 = ssub.s32 1, %s12
  %s15 = scalar_select 0, %s14, %s12
  $region1: #{actor_forward.1} parent=0
    #allocation2 [shape = 'u8[16384]{0}', space=vmem, size = 0x4000, scoped, tag = 'input window, operand 1, single buffered']
    #allocation3 [shape = 's32[1]{0}', space=sflag, size = 0x4, scoped, tag = 'scoped memory for actor_forward.1']
    #allocation4 [shape = 'u8[65536]{0}', space=vmem, size = 0x10000, scoped, tag = 'input window, operand 5, single buffered']
    #allocation5 [shape = 's32[1]{0}', space=sflag, size = 0x4, scoped, tag = 'scoped memory for actor_forward.1']
    #allocation6 [shape = 'u8[32768]{0}', space=vmem, size = 0x8000, scoped, tag = 'input window, operand 9, single buffered']
    %16 = vsyncpa [#allocation3], 0
    %17 = vsyncpa [#allocation5], 0
    // Predicated region
    $region2: #{actor_forward.1} parent=1 // pred_check
      _
    $region3: #{actor_forward.1} parent=1 // pred_check_branch
      %19 = sbr.rel (0) target = $region5
    $region4: #{actor_forward.1} parent=1 // pred_region
      _
    $region5: #{actor_forward.1} parent=1 // pred_fallthru
      _
    // Predicated region
    $region6: #{actor_forward.1} parent=1 // pred_check
      _
    $region7: #{actor_forward.1} parent=1 // pred_check_branch
      %21 = sbr.rel (0) target = $region9
    $region8: #{actor_forward.1} parent=1 // pred_region
      %s23 = ssub.s32 512, 512
      %24 = vsyncadd [#allocation3], %s23
      %s25 = sshll.u32 [#allocation2], 4
      %s26 = int_to_ptr.vmem [resolvable:$true] %s25
      %31 = dma.hbm_to_vmem [thread:$0]  %s1, 512, %s26, [#allocation3], 128, 128, 8
    $region9: #{actor_forward.1} parent=1 // pred_fallthru
      _
    // Predicated region
    $region10: #{actor_forward.1} parent=1 // pred_check
      _
    $region11: #{actor_forward.1} parent=1 // pred_check_branch
      %33 = sbr.rel (0) target = $region13
    $region12: #{actor_forward.1} parent=1 // pred_region
      _
    $region13: #{actor_forward.1} parent=1 // pred_fallthru
      _
    // Predicated region
    $region14: #{actor_forward.1} parent=1 // pred_check
      _
    $region15: #{actor_forward.1} parent=1 // pred_check_branch
      %35 = sbr.rel (0) target = $region17
    $region16: #{actor_forward.1} parent=1 // pred_region
      _
    $region17: #{actor_forward.1} parent=1 // pred_fallthru
      _
    // Predicated region
    $region18: #{actor_forward.1} parent=1 // pred_check
      _
    $region19: #{actor_forward.1} parent=1 // pred_check_branch
      %37 = sbr.rel (0) target = $region21
    $region20: #{actor_forward.1} parent=1 // pred_region
      _
    $region21: #{actor_forward.1} parent=1 // pred_fallthru
      _
    // Predicated region
    $region22: #{actor_forward.1} parent=1 // pred_check
      _
    $region23: #{actor_forward.1} parent=1 // pred_check_branch
      %39 = sbr.rel (0) target = $region25
    $region24: #{actor_forward.1} parent=1 // pred_region
      %s41 = ssub.s32 2048, 2048
      %42 = vsyncadd [#allocation5], %s41
      %s43 = sshll.u32 [#allocation4], 4
      %s44 = int_to_ptr.vmem [resolvable:$true] %s43
      %49 = dma.hbm_to_vmem [thread:$0]  %s5, 2048, %s44, [#allocation5], 64, 64, 4
    $region25: #{actor_forward.1} parent=1 // pred_fallthru
      _
    // Predicated region
    $region26: #{actor_forward.1} parent=1 // pred_check
      _
    $region27: #{actor_forward.1} parent=1 // pred_check_branch
      %51 = sbr.rel (0) target = $region29
    $region28: #{actor_forward.1} parent=1 // pred_region
      _
    $region29: #{actor_forward.1} parent=1 // pred_fallthru
      _
    // Predicated region
    $region30: #{actor_forward.1} parent=1 // pred_check
      _
    $region31: #{actor_forward.1} parent=1 // pred_check_branch
      %53 = sbr.rel (0) target = $region33
    $region32: #{actor_forward.1} parent=1 // pred_region
      _
    $region33: #{actor_forward.1} parent=1 // pred_fallthru
      _
    // Predicated region
    $region34: #{actor_forward.1} parent=1 // pred_check
      _
    $region35: #{actor_forward.1} parent=1 // pred_check_branch
      %55 = sbr.rel (0) target = $region37
    $region36: #{actor_forward.1} parent=1 // pred_region
      _
    $region37: #{actor_forward.1} parent=1 // pred_fallthru
      _
    // Predicated region
    $region38: #{actor_forward.1} parent=1 // pred_check
      _
    $region39: #{actor_forward.1} parent=1 // pred_check_branch
      %57 = sbr.rel (0) target = $region41
    $region40: #{actor_forward.1} parent=1 // pred_region
      %s59 = ssub.s32 1024, 1024
      %60 = vsyncadd [#allocation5], %s59
      %s61 = sshll.u32 [#allocation6], 4
      %s62 = int_to_ptr.vmem [resolvable:$true] %s61
      %67 = dma.hbm_to_vmem [thread:$0]  %s9, 1024, %s62, [#allocation5], 64, 64, 4
    $region41: #{actor_forward.1} parent=1 // pred_fallthru
      _
    // Predicated region
    $region42: #{actor_forward.1} parent=1 // pred_check
      _
    $region43: #{actor_forward.1} parent=1 // pred_check_branch
      %69 = sbr.rel (0) target = $region45
    $region44: #{actor_forward.1} parent=1 // pred_region
      _
    $region45: #{actor_forward.1} parent=1 // pred_fallthru
      _
    // Predicated region
    $region46: #{actor_forward.1} parent=1 // pred_check
      _
    $region47: #{actor_forward.1} parent=1 // pred_check_branch
      %71 = sbr.rel (0) target = $region49
    $region48: #{actor_forward.1} parent=1 // pred_region
      %72 = dma.done [#allocation3], 512
    $region49: #{actor_forward.1} parent=1 // pred_fallthru
      _
    // Predicated region
    $region50: #{actor_forward.1} parent=1 // pred_check
      _
    $region51: #{actor_forward.1} parent=1 // pred_check_branch
      %74 = sbr.rel (0) target = $region53
    $region52: #{actor_forward.1} parent=1 // pred_region
      %75 = dma.done [#allocation5], 2048
    $region53: #{actor_forward.1} parent=1 // pred_fallthru
      _
    // Predicated region
    $region54: #{actor_forward.1} parent=1 // pred_check
      _
    $region55: #{actor_forward.1} parent=1 // pred_check_branch
      %77 = sbr.rel (0) target = $region57
    $region56: #{actor_forward.1} parent=1 // pred_region
      %78 = dma.done [#allocation5], 1024
    $region57: #{actor_forward.1} parent=1 // pred_fallthru
      _
    %v80 = vld [vmem:[%s0] sm:$0xff]
    %v81 = vpack.c.bf16 %v80, %v80
    %v82 = vld [vmem:[#allocation2] sm:$0xff]
    %v83 = vld [vmem:[#allocation2 + $0x8] sm:$0xff]
    %v84 = vld [vmem:[#allocation2 + $0x10] sm:$0xff]
    %v85 = vld [vmem:[#allocation2 + $0x18] sm:$0xff]
    %v86 = vld [vmem:[%s2] sm:$0x3]
    %v88 = vlaneseq
    %v89 = vshrl.u32 %v88, 7
    %v90 = vsub.s32 0, %v89
    %v91 = vrot.slane %v86, %v90
    %v92 = vlaneseq
    %v93 = vshrl.u32 %v92, 7
    %v94 = vsub.s32 1, %v93
    %v95 = vrot.slane %v86, %v94
    %v102 = vunpack.c.l.b16 %v82
    %v103 = vunpack.c.h.b16 %v82
    %v104 = vunpack.c.l.b16 %v83
    %v105 = vunpack.c.h.b16 %v83
    %v106 = vunpack.c.l.b16 %v84
    %v107 = vunpack.c.h.b16 %v84
    %v108 = vunpack.c.l.b16 %v85
    %v109 = vunpack.c.h.b16 %v85
    %v110 = vpack.c.b16 %v104, %v102
    %v111 = vpack.c.b16 %v105, %v103
    %v112 = vpack.c.b16 %v108, %v106
    %v113 = vpack.c.b16 %v109, %v107
    %vm118 = vcmask 261120
    %v120 = vsel %vm118, %v81, 0
    %122 = vmatprep.subr.bf16.mxu0 %v111
    %123 = vmatpush1.bf16.msra.mxu0 %v110
    %124 = vmatprep.subr.bf16.mxu0 %v113
    %125 = vmatpush1.bf16.msra.mxu0 %v112
    %126 = vmatprep.subr.bf16.mxu0 0
    %127 = vmatpush1.bf16.msra.mxu0 0
    %128 = vmatprep.subr.bf16.mxu0 0
    %129 = vmatpush1.bf16.msra.mxu0 0
    %130 = vmatprep.subr.bf16.mxu0 0
    %131 = vmatpush1.bf16.msra.mxu0 0
    %132 = vmatprep.subr.bf16.mxu0 0
    %133 = vmatpush1.bf16.msra.mxu0 0
    %134 = vmatprep.subr.bf16.mxu0 0
    %135 = vmatpush1.bf16.msra.mxu0 0
    %136 = vmatprep.subr.bf16.mxu0 0
    %137 = vmatpush1.bf16.msra.mxu0 0
    %138 = vmatprep.subr.bf16.mxu0 0
    %139 = vmatpush1.bf16.msra.mxu0 0
    %140 = vmatprep.subr.bf16.mxu0 0
    %141 = vmatpush1.bf16.msra.mxu0 0
    %142 = vmatprep.subr.bf16.mxu0 0
    %143 = vmatpush1.bf16.msra.mxu0 0
    %144 = vmatprep.subr.bf16.mxu0 0
    %145 = vmatpush1.bf16.msra.mxu0 0
    %146 = vmatprep.subr.bf16.mxu0 0
    %147 = vmatpush1.bf16.msra.mxu0 0
    %148 = vmatprep.subr.bf16.mxu0 0
    %149 = vmatpush1.bf16.msra.mxu0 0
    %150 = vmatprep.subr.bf16.mxu0 0
    %151 = vmatpush1.bf16.msra.mxu0 0
    %152 = vmatprep.subr.bf16.mxu0 0
    %153 = vmatpush1.bf16.msra.mxu0 0
    %154 = vmatprep.mubr.bf16.mxu0 0
    %155 = vmatmul.mubr.bf16.gmra.mrb[0].mxu0 %v120
    %v156 = vpop.f32.mrb[0].mxu0
    %v157 = vadd.f32 %v91, %v156
    %v158 = vpop.f32.mrb[0].mxu0
    %v159 = vadd.f32 %v95, %v158
    %v160 = vpop.f32.mrb[0].mxu0
    %v161 = vpop.f32.mrb[0].mxu0
    %162 = vdwg.mxu0
    %v163 = vld [vmem:[%s3] sm:$0x3]
    %v164 = vld [vmem:[%s4] sm:$0x3]
    %v165 = vadd.f32 %v157, %v159
    %166 = vadd.xlane.f32.xlu0 %v165
    %v167 = vpop.xlane.xlu0 %166
    %v168 = vrcp.pop 256.0
    %v169 = vmul.f32 %v167, %v168
    %v170 = vmul.f32 %v157, %v157
    %v171 = vmul.f32 %v159, %v159
    %v172 = vadd.f32 %v170, %v171
    %173 = vadd.xlane.f32.xlu0 %v172
    %v174 = vpop.xlane.xlu0 %173
    %v175 = vmul.f32 %v174, %v168
    %v176 = vmul.f32 %v169, %v169
    %v177 = vsub.f32 %v175, %v176
    %v178 = vmax.f32 %v177, 0.0
    %v179 = vsub.f32 %v157, %v169
    %v180 = vsub.f32 %v159, %v169
    %v181 = vadd.f32 %v178, 1e-05
    %v182 = vrsqrt.pop %v181
    %v183 = vmul.f32 %v179, %v182
    %v184 = vmul.f32 %v180, %v182
    %v186 = vlaneseq
    %v187 = vshrl.u32 %v186, 7
    %v188 = vsub.s32 0, %v187
    %v189 = vrot.slane %v163, %v188
    %v190 = vlaneseq
    %v191 = vshrl.u32 %v190, 7
    %v192 = vsub.s32 1, %v191
    %v193 = vrot.slane %v163, %v192
    %v196 = vmul.f32 %v183, %v189
    %v197 = vmul.f32 %v184, %v193
    %v199 = vlaneseq
    %v200 = vshrl.u32 %v199, 7
    %v201 = vsub.s32 0, %v200
    %v202 = vrot.slane %v164, %v201
    %v203 = vlaneseq
    %v204 = vshrl.u32 %v203, 7
    %v205 = vsub.s32 1, %v204
    %v206 = vrot.slane %v164, %v205
    %v209 = vadd.f32 %v196, %v202
    %v210 = vadd.f32 %v197, %v206
    %v211 = vmax.f32 %v209, 0.0
    %v212 = vmax.f32 %v210, 0.0
    %v213 = vpack.c.bf16 %v211, %v211
    %v214 = vpack.c.bf16 %v212, %v212
    %v215 = vld [vmem:[#allocation4] sm:$0xf]
    %v216 = vld [vmem:[#allocation4 + $0x4] sm:$0xf]
    %v217 = vld [vmem:[#allocation4 + $0x8] sm:$0xf]
    %v218 = vld [vmem:[#allocation4 + $0xc] sm:$0xf]
    %v219 = vld [vmem:[#allocation4 + $0x10] sm:$0xf]
    %v220 = vld [vmem:[#allocation4 + $0x14] sm:$0xf]
    %v221 = vld [vmem:[#allocation4 + $0x18] sm:$0xf]
    %v222 = vld [vmem:[#allocation4 + $0x1c] sm:$0xf]
    %v223 = vld [vmem:[#allocation4 + $0x20] sm:$0xf]
    %v224 = vld [vmem:[#allocation4 + $0x24] sm:$0xf]
    %v225 = vld [vmem:[#allocation4 + $0x28] sm:$0xf]
    %v226 = vld [vmem:[#allocation4 + $0x2c] sm:$0xf]
    %v227 = vld [vmem:[#allocation4 + $0x30] sm:$0xf]
    %v228 = vld [vmem:[#allocation4 + $0x34] sm:$0xf]
    %v229 = vld [vmem:[#allocation4 + $0x38] sm:$0xf]
    %v230 = vld [vmem:[#allocation4 + $0x3c] sm:$0xf]
    %v231 = vld [vmem:[#allocation4 + $0x40] sm:$0xf]
    %v232 = vld [vmem:[#allocation4 + $0x44] sm:$0xf]
    %v233 = vld [vmem:[#allocation4 + $0x48] sm:$0xf]
    %v234 = vld [vmem:[#allocation4 + $0x4c] sm:$0xf]
    %v235 = vld [vmem:[#allocation4 + $0x50] sm:$0xf]
    %v236 = vld [vmem:[#allocation4 + $0x54] sm:$0xf]
    %v237 = vld [vmem:[#allocation4 + $0x58] sm:$0xf]
    %v238 = vld [vmem:[#allocation4 + $0x5c] sm:$0xf]
    %v239 = vld [vmem:[#allocation4 + $0x60] sm:$0xf]
    %v240 = vld [vmem:[#allocation4 + $0x64] sm:$0xf]
    %v241 = vld [vmem:[#allocation4 + $0x68] sm:$0xf]
    %v242 = vld [vmem:[#allocation4 + $0x6c] sm:$0xf]
    %v243 = vld [vmem:[#allocation4 + $0x70] sm:$0xf]
    %v244 = vld [vmem:[#allocation4 + $0x74] sm:$0xf]
    %v245 = vld [vmem:[#allocation4 + $0x78] sm:$0xf]
    %v246 = vld [vmem:[#allocation4 + $0x7c] sm:$0xf]
    %v247 = vld [vmem:[%s6] sm:$0x1]
    %v249 = vlaneseq
    %v250 = vshrl.u32 %v249, 7
    %v251 = vsub.s32 0, %v250
    %v252 = vrot.slane %v247, %v251
    %v286 = vunpack.c.l.b16 %v215
    %v287 = vunpack.c.l.b16 %v216
    %v288 = vunpack.c.l.b16 %v217
    %v289 = vunpack.c.l.b16 %v218
    %v290 = vunpack.c.l.b16 %v219
    %v291 = vunpack.c.l.b16 %v220
    %v292 = vunpack.c.l.b16 %v221
    %v293 = vunpack.c.l.b16 %v222
    %v294 = vunpack.c.l.b16 %v223
    %v295 = vunpack.c.l.b16 %v224
    %v296 = vunpack.c.l.b16 %v225
    %v297 = vunpack.c.l.b16 %v226
    %v298 = vunpack.c.l.b16 %v227
    %v299 = vunpack.c.l.b16 %v228
    %v300 = vunpack.c.l.b16 %v229
    %v301 = vunpack.c.l.b16 %v230
    %v302 = vunpack.c.l.b16 %v231
    %v303 = vunpack.c.l.b16 %v232
    %v304 = vunpack.c.l.b16 %v233
    %v305 = vunpack.c.l.b16 %v234
    %v306 = vunpack.c.l.b16 %v235
    %v307 = vunpack.c.l.b16 %v236
    %v308 = vunpack.c.l.b16 %v237
    %v309 = vunpack.c.l.b16 %v238
    %v310 = vunpack.c.l.b16 %v239
    %v311 = vunpack.c.l.b16 %v240
    %v312 = vunpack.c.l.b16 %v241
    %v313 = vunpack.c.l.b16 %v242
    %v314 = vunpack.c.l.b16 %v243
    %v315 = vunpack.c.l.b16 %v244
    %v316 = vunpack.c.l.b16 %v245
    %v317 = vunpack.c.l.b16 %v246
    %v318 = vpack.c.b16 %v287, %v286
    %v319 = vpack.c.b16 %v289, %v288
    %v320 = vpack.c.b16 %v291, %v290
    %v321 = vpack.c.b16 %v293, %v292
    %v322 = vpack.c.b16 %v295, %v294
    %v323 = vpack.c.b16 %v297, %v296
    %v324 = vpack.c.b16 %v299, %v298
    %v325 = vpack.c.b16 %v301, %v300
    %v326 = vpack.c.b16 %v303, %v302
    %v327 = vpack.c.b16 %v305, %v304
    %v328 = vpack.c.b16 %v307, %v306
    %v329 = vpack.c.b16 %v309, %v308
    %v330 = vpack.c.b16 %v311, %v310
    %v331 = vpack.c.b16 %v313, %v312
    %v332 = vpack.c.b16 %v315, %v314
    %v333 = vpack.c.b16 %v317, %v316
    %350 = vmatprep.subr.bf16.mxu0 0
    %351 = vmatpush1.bf16.msra.mxu0 %v318
    %352 = vmatprep.subr.bf16.mxu0 0
    %353 = vmatpush1.bf16.msra.mxu0 %v319
    %354 = vmatprep.subr.bf16.mxu0 0
    %355 = vmatpush1.bf16.msra.mxu0 %v320
    %356 = vmatprep.subr.bf16.mxu0 0
    %357 = vmatpush1.bf16.msra.mxu0 %v321
    %358 = vmatprep.subr.bf16.mxu0 0
    %359 = vmatpush1.bf16.msra.mxu0 %v322
    %360 = vmatprep.subr.bf16.mxu0 0
    %361 = vmatpush1.bf16.msra.mxu0 %v323
    %362 = vmatprep.subr.bf16.mxu0 0
    %363 = vmatpush1.bf16.msra.mxu0 %v324
    %364 = vmatprep.subr.bf16.mxu0 0
    %365 = vmatpush1.bf16.msra.mxu0 %v325
    %366 = vmatprep.subr.bf16.mxu0 0
    %367 = vmatpush1.bf16.msra.mxu0 %v326
    %368 = vmatprep.subr.bf16.mxu0 0
    %369 = vmatpush1.bf16.msra.mxu0 %v327
    %370 = vmatprep.subr.bf16.mxu0 0
    %371 = vmatpush1.bf16.msra.mxu0 %v328
    %372 = vmatprep.subr.bf16.mxu0 0
    %373 = vmatpush1.bf16.msra.mxu0 %v329
    %374 = vmatprep.subr.bf16.mxu0 0
    %375 = vmatpush1.bf16.msra.mxu0 %v330
    %376 = vmatprep.subr.bf16.mxu0 0
    %377 = vmatpush1.bf16.msra.mxu0 %v331
    %378 = vmatprep.subr.bf16.mxu0 0
    %379 = vmatpush1.bf16.msra.mxu0 %v332
    %380 = vmatprep.subr.bf16.mxu0 0
    %381 = vmatpush1.bf16.msra.mxu0 %v333
    %382 = vmatprep.mubr.bf16.mxu0 %v214
    %383 = vmatmul.mubr.bf16.gmra.mrb[0].mxu0 %v213
    %v384 = vpop.f32.mrb[0].mxu0
    %v385 = vadd.f32 %v252, %v384
    %v386 = vpop.f32.mrb[0].mxu0
    %v387 = vpop.f32.mrb[0].mxu0
    %v388 = vpop.f32.mrb[0].mxu0
    %389 = vdwg.mxu0
    %v390 = vld [vmem:[%s7] sm:$0x1]
    %v391 = vld [vmem:[%s8] sm:$0x1]
    %392 = vadd.xlane.f32.xlu0 %v385
    %v393 = vpop.xlane.xlu0 %392
    %v394 = vrcp.pop 128.0
    %v395 = vmul.f32 %v393, %v394
    %v396 = vmul.f32 %v385, %v385
    %397 = vadd.xlane.f32.xlu0 %v396
    %v398 = vpop.xlane.xlu0 %397
    %v399 = vmul.f32 %v398, %v394
    %v400 = vmul.f32 %v395, %v395
    %v401 = vsub.f32 %v399, %v400
    %v402 = vmax.f32 %v401, 0.0
    %v403 = vsub.f32 %v385, %v395
    %v404 = vadd.f32 %v402, 1e-05
    %v405 = vrsqrt.pop %v404
    %v406 = vmul.f32 %v403, %v405
    %v408 = vlaneseq
    %v409 = vshrl.u32 %v408, 7
    %v410 = vsub.s32 0, %v409
    %v411 = vrot.slane %v390, %v410
    %v413 = vmul.f32 %v406, %v411
    %v415 = vlaneseq
    %v416 = vshrl.u32 %v415, 7
    %v417 = vsub.s32 0, %v416
    %v418 = vrot.slane %v391, %v417
    %v420 = vadd.f32 %v413, %v418
    %v421 = vmax.f32 %v420, 0.0
    %v422 = vpack.c.bf16 %v421, %v421
    %v423 = vld [vmem:[#allocation6] sm:$0xf]
    %v424 = vld [vmem:[#allocation6 + $0x4] sm:$0xf]
    %v425 = vld [vmem:[#allocation6 + $0x8] sm:$0xf]
    %v426 = vld [vmem:[#allocation6 + $0xc] sm:$0xf]
    %v427 = vld [vmem:[#allocation6 + $0x10] sm:$0xf]
    %v428 = vld [vmem:[#allocation6 + $0x14] sm:$0xf]
    %v429 = vld [vmem:[#allocation6 + $0x18] sm:$0xf]
    %v430 = vld [vmem:[#allocation6 + $0x1c] sm:$0xf]
    %v431 = vld [vmem:[#allocation6 + $0x20] sm:$0xf]
    %v432 = vld [vmem:[#allocation6 + $0x24] sm:$0xf]
    %v433 = vld [vmem:[#allocation6 + $0x28] sm:$0xf]
    %v434 = vld [vmem:[#allocation6 + $0x2c] sm:$0xf]
    %v435 = vld [vmem:[#allocation6 + $0x30] sm:$0xf]
    %v436 = vld [vmem:[#allocation6 + $0x34] sm:$0xf]
    %v437 = vld [vmem:[#allocation6 + $0x38] sm:$0xf]
    %v438 = vld [vmem:[#allocation6 + $0x3c] sm:$0xf]
    %v439 = vld [vmem:[%s10] sm:$0x1]
    %v441 = vlaneseq
    %v442 = vshrl.u32 %v441, 7
    %v443 = vsub.s32 0, %v442
    %v444 = vrot.slane %v439, %v443
    %v462 = vunpack.c.l.b16 %v423
    %v463 = vunpack.c.l.b16 %v424
    %v464 = vunpack.c.l.b16 %v425
    %v465 = vunpack.c.l.b16 %v426
    %v466 = vunpack.c.l.b16 %v427
    %v467 = vunpack.c.l.b16 %v428
    %v468 = vunpack.c.l.b16 %v429
    %v469 = vunpack.c.l.b16 %v430
    %v470 = vunpack.c.l.b16 %v431
    %v471 = vunpack.c.l.b16 %v432
    %v472 = vunpack.c.l.b16 %v433
    %v473 = vunpack.c.l.b16 %v434
    %v474 = vunpack.c.l.b16 %v435
    %v475 = vunpack.c.l.b16 %v436
    %v476 = vunpack.c.l.b16 %v437
    %v477 = vunpack.c.l.b16 %v438
    %v478 = vpack.c.b16 %v463, %v462
    %v479 = vpack.c.b16 %v465, %v464
    %v480 = vpack.c.b16 %v467, %v466
    %v481 = vpack.c.b16 %v469, %v468
    %v482 = vpack.c.b16 %v471, %v470
    %v483 = vpack.c.b16 %v473, %v472
    %v484 = vpack.c.b16 %v475, %v474
    %v485 = vpack.c.b16 %v477, %v476
    %494 = vmatprep.subr.bf16.mxu0 0
    %495 = vmatpush1.bf16.msra.mxu0 %v478
    %496 = vmatprep.subr.bf16.mxu0 0
    %497 = vmatpush1.bf16.msra.mxu0 %v479
    %498 = vmatprep.subr.bf16.mxu0 0
    %499 = vmatpush1.bf16.msra.mxu0 %v480
    %500 = vmatprep.subr.bf16.mxu0 0
    %501 = vmatpush1.bf16.msra.mxu0 %v481
    %502 = vmatprep.subr.bf16.mxu0 0
    %503 = vmatpush1.bf16.msra.mxu0 %v482
    %504 = vmatprep.subr.bf16.mxu0 0
    %505 = vmatpush1.bf16.msra.mxu0 %v483
    %506 = vmatprep.subr.bf16.mxu0 0
    %507 = vmatpush1.bf16.msra.mxu0 %v484
    %508 = vmatprep.subr.bf16.mxu0 0
    %509 = vmatpush1.bf16.msra.mxu0 %v485
    %510 = vmatprep.subr.bf16.mxu0 0
    %511 = vmatpush1.bf16.msra.mxu0 0
    %512 = vmatprep.subr.bf16.mxu0 0
    %513 = vmatpush1.bf16.msra.mxu0 0
    %514 = vmatprep.subr.bf16.mxu0 0
    %515 = vmatpush1.bf16.msra.mxu0 0
    %516 = vmatprep.subr.bf16.mxu0 0
    %517 = vmatpush1.bf16.msra.mxu0 0
    %518 = vmatprep.subr.bf16.mxu0 0
    %519 = vmatpush1.bf16.msra.mxu0 0
    %520 = vmatprep.subr.bf16.mxu0 0
    %521 = vmatpush1.bf16.msra.mxu0 0
    %522 = vmatprep.subr.bf16.mxu0 0
    %523 = vmatpush1.bf16.msra.mxu0 0
    %524 = vmatprep.subr.bf16.mxu0 0
    %525 = vmatpush1.bf16.msra.mxu0 0
    %526 = vmatprep.mubr.bf16.mxu0 0
    %527 = vmatmul.mubr.bf16.gmra.mrb[0].mxu0 %v422
    %v528 = vpop.f32.mrb[0].mxu0
    %v529 = vadd.f32 %v444, %v528
    %v530 = vpop.f32.mrb[0].mxu0
    %v531 = vpop.f32.mrb[0].mxu0
    %v532 = vpop.f32.mrb[0].mxu0
    %533 = vdwg.mxu0
    %v534 = vtanh.pop %v529
    %535 = vst [vmem:[%s11] sm:$0xff] %v534
    // Predicated region
    $region58: #{actor_forward.1} parent=1 // pred_check
      _
    $region59: #{actor_forward.1} parent=1 // pred_check_branch
      %537 = sbr.rel (0) target = $region61
    $region60: #{actor_forward.1} parent=1 // pred_region
      _
    $region61: #{actor_forward.1} parent=1 // pred_fallthru
      _
    // Predicated region
    $region62: #{actor_forward.1} parent=1 // pred_check
      _
    $region63: #{actor_forward.1} parent=1 // pred_check_branch
      %539 = sbr.rel (0) target = $region65
    $region64: #{actor_forward.1} parent=1 // pred_region
      _
    $region65: #{actor_forward.1} parent=1 // pred_fallthru
      _
    %540 = vsyncpa [#allocation3], 1
    %541 = vsyncpa [#allocation5], 1

</llo_original>
